<compile_context>
chip_gen: v5e
topology: v5e:2x2
jax: 0.10.0
libtpu: 0.0.40
codegen_flags: <defaults>
</compile_context>

<pallas_src>
import functools
import math

import jax
import jax.numpy as jnp
from jax.experimental import pallas as pl
from jax.experimental.pallas import tpu as pltpu

EPS = 1e-5  # default eps of nn.InstanceNorm2d / nn.BatchNorm2d


def _dubin_kernel(half, c_tile, eps, emit_mixed, x_ref, g_ref, b_ref, o_ref):
    """One channel tile of DuBIN.

    x_ref : (N, c_tile, HW) input block (f32 or bf16; math done in f32)
    g_ref : (c_tile, 1) f32 affine scale (channel on the sublane axis)
    b_ref : (c_tile, 1) f32 affine shift
    o_ref : (N, c_tile, HW) output block (same dtype as input)

    Channels [0, half) use InstanceNorm statistics (per (n, c) over HW); the rest use
    (Dual)BatchNorm main-branch training statistics (per c over (N, HW)).
    """
    i = pl.program_id(0)
    c0 = i * c_tile                               # first global channel of this tile
    x = x_ref[...].astype(jnp.float32)            # single upcast, reused everywhere
    g = g_ref[...].astype(jnp.float32)[None]      # (1, c_tile, 1) -> lane broadcast is free
    b = b_ref[...].astype(jnp.float32)[None]
    n, ct, hw = x.shape

    def _write(mu, var):
        # Fused affine: o = x*scale + shift (2 VALU ops/element instead of 4).
        inv = jax.lax.rsqrt(jnp.maximum(var, 0.0) + eps)
        scale = inv * g
        shift = b - mu * scale
        o_ref[...] = (x * scale + shift).astype(o_ref.dtype)

    def _in_stats():
        # InstanceNorm2d(affine=True): per-(n, c) stats over HW. Single reduction
        # sweep: var = E[x^2] - mu^2 (cancellation-prone only when |mean| >> std,
        # which does not occur for typical activations).
        s1 = jnp.sum(x, axis=-1, keepdims=True)        # (N, c_tile, 1)
        s2 = jnp.sum(x * x, axis=-1, keepdims=True)
        mu = s1 * (1.0 / hw)
        return mu, s2 * (1.0 / hw) - mu * mu

    def _bn_stats():
        # DualBatchNorm2d main branch, training mode: per-channel stats over (N, HW).
        # TODO(synk): eval-mode running statistics / adversarial-route branch of
        #             DualBatchNorm2d are not modeled (route flag not implemented).
        s1 = jnp.sum(x, axis=(0, 2), keepdims=True)    # (1, c_tile, 1)
        s2 = jnp.sum(x * x, axis=(0, 2), keepdims=True)
        inv_cnt = 1.0 / float(n * hw)
        mu = s1 * inv_cnt
        return mu, s2 * inv_cnt - mu * mu

    @pl.when(c0 + c_tile <= half)
    def _():                                       # tile entirely in the IN half
        mu, var = _in_stats()
        _write(mu, var)

    @pl.when(c0 >= half)
    def _():                                       # tile entirely in the BN half
        mu, var = _bn_stats()
        _write(mu, var)

    if emit_mixed:
        # The IN/BN split does not land on a tile boundary: exactly one tile computes
        # both statistics and selects per channel (emitted only when statically needed).
        @pl.when(jnp.logical_and(c0 < half, c0 + c_tile > half))
        def _():
            mu_i, var_i = _in_stats()
            mu_b, var_b = _bn_stats()
            ch = jax.lax.broadcasted_iota(jnp.int32, (1, ct, 1), 1) + c0
            is_in = ch < half
            _write(jnp.where(is_in, mu_i, mu_b), jnp.where(is_in, var_i, var_b))


def _vmem_limit_bytes():
    """Generation-aware scoped-VMEM limit: ~75% of physical capacity with headroom
    (≈96 MiB on v5e/v6e's 128 MiB, ≈48 MiB on v7x's 64 MiB)."""
    cap = 64 * 1024 * 1024                         # conservative default (v7x per-TC)
    try:
        cap = int(pltpu.get_tpu_info().vmem_capacity_bytes)
    except Exception:
        pass
    return max(16 * 1024 * 1024, min((cap * 3) // 4, cap - 8 * 1024 * 1024))


def _pick_c_tile(c, half, n, hw, itemsize, vmem_limit_bytes):
    """Channel tile that (a) divides C, (b) is a sublane-pack multiple (8 f32 / 16 bf16
    / 32 int8) or equals C (so the block shape is always legal), (c) fits a VMEM budget
    that accounts for double-buffered in+out plus f32 temporaries, and (d) prefers
    tiles that put the IN/BN split on a tile boundary."""
    pack = max(8, 32 // max(1, itemsize))          # f32 -> 8, bf16 -> 16, int8 -> 32
    # Per element: 2x in + 2x out (double-buffered) + ~2 f32 temporaries (x, x*x).
    bytes_per_elem = 4 * itemsize + 8
    budget_elems = max(1, (3 * vmem_limit_bytes // 4) // bytes_per_elem)
    cap = max(1, budget_elems // max(1, n * hw))   # channels per block that fit

    def _candidates(require_align):
        out = []
        for t in range(1, c + 1):
            if c % t:
                continue
            if not (t % pack == 0 or t == c):
                continue
            if require_align and 0 < half < c and half % t:
                continue
            out.append(t)
        return out

    aligned = _candidates(True)
    general = _candidates(False)
    for cands in (aligned, general):
        fitting = [t for t in cands if t <= cap]
        if fitting:
            return max(fitting)
    # Nothing fits the budget: take the smallest legal tile.
    # TODO(synk): for extremely large N*H*W a single channel's (N, HW) slab may not fit
    #             VMEM; that case needs a two-pass sum/sumsq accumulation over a spatial
    #             grid axis (hits at half the feature-map size on v7x's 64 MiB VMEM).
    return min(general) if general else c


def make_dubin_params(gamma_in, beta_in, gamma_bn, beta_bn):
    """Build the fused (C, 1) affine params once at init (hoisted out of the forward)."""
    gamma = jnp.concatenate(
        [jnp.asarray(gamma_in, jnp.float32).reshape(-1),
         jnp.asarray(gamma_bn, jnp.float32).reshape(-1)]).reshape(-1, 1)
    beta = jnp.concatenate(
        [jnp.asarray(beta_in, jnp.float32).reshape(-1),
         jnp.asarray(beta_bn, jnp.float32).reshape(-1)]).reshape(-1, 1)
    return gamma, beta


def dubin_forward(x_nchw, gamma, beta, *, ratio=0.5, eps=EPS):
    """DuBIN forward. x_nchw: (N, C, H, W) f32/bf16; gamma/beta: fused (C, 1) f32
    params from make_dubin_params. Returns same shape/dtype as x_nchw."""
    n, c, h, w = x_nchw.shape
    half = int(c * ratio)
    hw = h * w

    # Keep the I/O dtype (bf16 stays bf16 => half the HBM traffic); the kernel upcasts
    # once to f32 for the statistics / normalization math.
    x3 = x_nchw.reshape(n, c, hw)

    vmem_limit = _vmem_limit_bytes()
    c_tile = _pick_c_tile(c, half, n, hw, x3.dtype.itemsize, vmem_limit)
    num_tiles = c // c_tile
    emit_mixed = (0 < half < c) and (half % c_tile != 0)

    # TODO(synk): on v7x, an extra parallel grid axis over N for the IN half would give
    #             the 2-TC megacore more parallel steps for very small channel counts.

    kernel = functools.partial(_dubin_kernel, half, c_tile, float(eps), emit_mixed)

    out3 = pl.pallas_call(
        kernel,
        out_shape=jax.ShapeDtypeStruct((n, c, hw), x3.dtype),
        grid=(num_tiles,),
        in_specs=[
            pl.BlockSpec((n, c_tile, hw), lambda i: (0, i, 0)),
            pl.BlockSpec((c_tile, 1), lambda i: (i, 0)),
            pl.BlockSpec((c_tile, 1), lambda i: (i, 0)),
        ],
        out_specs=pl.BlockSpec((n, c_tile, hw), lambda i: (0, i, 0)),
        compiler_params=pltpu.CompilerParams(
            dimension_semantics=("parallel",),   # channel tiles are independent (megacore)
            vmem_limit_bytes=vmem_limit,
        ),
    )(x3, gamma, beta)

    return out3.reshape(n, c, h, w)


def _reference(x, gamma_in, beta_in, gamma_bn, beta_bn, ratio=0.5, eps=EPS):
    """Pure-JAX reference of DuBIN (training-mode BN, biased variances)."""
    n, c, h, w = x.shape
    half = int(c * ratio)
    xi, xb = x[:, :half], x[:, half:]
    mu_i = xi.mean(axis=(2, 3), keepdims=True)
    var_i = ((xi - mu_i) ** 2).mean(axis=(2, 3), keepdims=True)
    o1 = (xi - mu_i) / jnp.sqrt(var_i + eps)
    o1 = o1 * gamma_in[None, :, None, None] + beta_in[None, :, None, None]
    mu_b = xb.mean(axis=(0, 2, 3), keepdims=True)
    var_b = ((xb - mu_b) ** 2).mean(axis=(0, 2, 3), keepdims=True)
    o2 = (xb - mu_b) / jnp.sqrt(var_b + eps)
    o2 = o2 * gamma_bn[None, :, None, None] + beta_bn[None, :, None, None]
    return jnp.concatenate([o1, o2], axis=1)


if __name__ == "__main__":
    key = jax.random.PRNGKey(0)
    k_x, k_gi, k_bi, k_gb, k_bb, k_x2 = jax.random.split(key, 6)

    # Case 1: planes=16, ratio=0.5 -> half=8; split lands on a sublane-aligned tile
    # boundary (two parallel grid steps).
    N, C, H, W = 2, 16, 16, 16
    half = C // 2

    x = jax.random.normal(k_x, (N, C, H, W), dtype=jnp.float32)
    gamma_in = 1.0 + 0.1 * jax.random.normal(k_gi, (half,), dtype=jnp.float32)
    beta_in = 0.1 * jax.random.normal(k_bi, (half,), dtype=jnp.float32)
    gamma_bn = 1.0 + 0.1 * jax.random.normal(k_gb, (C - half,), dtype=jnp.float32)
    beta_bn = 0.1 * jax.random.normal(k_bb, (C - half,), dtype=jnp.float32)
    gamma, beta = make_dubin_params(gamma_in, beta_in, gamma_bn, beta_bn)

    out = jax.block_until_ready(dubin_forward(x, gamma, beta))
    ref = _reference(x, gamma_in, beta_in, gamma_bn, beta_bn)
    assert out.shape == (N, C, H, W)
    assert out.dtype == x.dtype
    assert jnp.allclose(out, ref, atol=1e-4, rtol=1e-4), float(
        jnp.max(jnp.abs(out - ref)))

    # Case 2: planes=4 -> half=2; the split falls inside the single (full-C) tile,
    # exercising the masked mixed-tile path.
    N2, C2 = 2, 4
    half2 = C2 // 2
    x2 = jax.random.normal(k_x2, (N2, C2, H, W), dtype=jnp.float32)
    g2, b2 = make_dubin_params(gamma_in[:half2], beta_in[:half2],
                               gamma_bn[:C2 - half2], beta_bn[:C2 - half2])
    out2 = jax.block_until_ready(dubin_forward(x2, g2, b2))
    ref2 = _reference(x2, gamma_in[:half2], beta_in[:half2],
                      gamma_bn[:C2 - half2], beta_bn[:C2 - half2])
    assert jnp.allclose(out2, ref2, atol=1e-4, rtol=1e-4), float(
        jnp.max(jnp.abs(out2 - ref2)))

    print("KERNEL_OK")
</pallas_src>

<mosaic_0001>
module attributes {stable_mosaic.version = 11 : i64} {
  func.func @_dubin_kernel(%arg0: i32, %arg1: memref<2x8x256xf32, #tpu.memory_space<vmem>>, %arg2: memref<8x1xf32, #tpu.memory_space<vmem>>, %arg3: memref<8x1xf32, #tpu.memory_space<vmem>>, %arg4: memref<2x8x256xf32, #tpu.memory_space<vmem>>) attributes {dimension_semantics = [#tpu.dimension_semantics<parallel>], iteration_bounds = array<i64: 2>, scalar_prefetch = 0 : i64, scratch_operands = 0 : i64, tpu.core_type = #tpu.core_type<tc>, window_params = [{transform_indices = @transform_0, window_bounds = array<i64: 2, 8, 256>}, {transform_indices = @transform_1, window_bounds = array<i64: 8, 1>}, {transform_indices = @transform_2, window_bounds = array<i64: 8, 1>}, {transform_indices = @transform_3, window_bounds = array<i64: 2, 8, 256>}]} {
    %c8_i32 = arith.constant 8 : i32
    %0 = arith.muli %arg0, %c8_i32 : i32
    %c0 = arith.constant 0 : index
    %c0_0 = arith.constant 0 : index
    %c0_1 = arith.constant 0 : index
    %1 = vector.load %arg1[%c0, %c0_0, %c0_1] : memref<2x8x256xf32, #tpu.memory_space<vmem>>, vector<2x8x256xf32>
    %c0_2 = arith.constant 0 : index
    %c0_3 = arith.constant 0 : index
    %2 = vector.load %arg2[%c0_2, %c0_3] : memref<8x1xf32, #tpu.memory_space<vmem>>, vector<8x1xf32>
    %3 = vector.shape_cast %2 : vector<8x1xf32> to vector<1x8x1xf32>
    %c0_4 = arith.constant 0 : index
    %c0_5 = arith.constant 0 : index
    %4 = vector.load %arg3[%c0_4, %c0_5] : memref<8x1xf32, #tpu.memory_space<vmem>>, vector<8x1xf32>
    %5 = vector.shape_cast %4 : vector<8x1xf32> to vector<1x8x1xf32>
    %c8_i32_6 = arith.constant 8 : i32
    %6 = arith.addi %0, %c8_i32_6 : i32
    %c8_i32_7 = arith.constant 8 : i32
    %7 = arith.cmpi sle, %6, %c8_i32_7 : i32
    %8 = arith.extui %7 : i1 to i32
    %c0_i32 = arith.constant 0 : i32
    %9 = arith.cmpi ne, %8, %c0_i32 : i32
    scf.if %9 {
      %cst = arith.constant dense<0.000000e+00> : vector<2x8xf32>
      %13 = vector.multi_reduction <add>, %1, %cst [2] : vector<2x8x256xf32> to vector<2x8xf32>
      %14 = vector.shape_cast %13 : vector<2x8xf32> to vector<2x8x1xf32>
      %15 = arith.mulf %1, %1 : vector<2x8x256xf32>
      %cst_10 = arith.constant dense<0.000000e+00> : vector<2x8xf32>
      %16 = vector.multi_reduction <add>, %15, %cst_10 [2] : vector<2x8x256xf32> to vector<2x8xf32>
      %17 = vector.shape_cast %16 : vector<2x8xf32> to vector<2x8x1xf32>
      %cst_11 = arith.constant 3.906250e-03 : f32
      %18 = vector.broadcast %cst_11 : f32 to vector<2x8x1xf32>
      %19 = arith.mulf %14, %18 : vector<2x8x1xf32>
      %cst_12 = arith.constant 3.906250e-03 : f32
      %20 = vector.broadcast %cst_12 : f32 to vector<2x8x1xf32>
      %21 = arith.mulf %17, %20 : vector<2x8x1xf32>
      %22 = arith.mulf %19, %19 : vector<2x8x1xf32>
      %23 = arith.subf %21, %22 : vector<2x8x1xf32>
      %cst_13 = arith.constant 0.000000e+00 : f32
      %24 = vector.broadcast %cst_13 : f32 to vector<2x8x1xf32>
      %25 = arith.maximumf %23, %24 : vector<2x8x1xf32>
      %cst_14 = arith.constant 9.99999974E-6 : f32
      %26 = vector.broadcast %cst_14 : f32 to vector<2x8x1xf32>
      %27 = arith.addf %25, %26 : vector<2x8x1xf32>
      %28 = math.rsqrt %27 : vector<2x8x1xf32>
      %29 = vector.broadcast %3 : vector<1x8x1xf32> to vector<2x8x1xf32>
      %30 = arith.mulf %28, %29 : vector<2x8x1xf32>
      %31 = arith.mulf %19, %30 : vector<2x8x1xf32>
      %32 = vector.broadcast %5 : vector<1x8x1xf32> to vector<2x8x1xf32>
      %33 = arith.subf %32, %31 : vector<2x8x1xf32>
      %34 = vector.broadcast %30 : vector<2x8x1xf32> to vector<2x8x256xf32>
      %35 = arith.mulf %1, %34 : vector<2x8x256xf32>
      %36 = vector.broadcast %33 : vector<2x8x1xf32> to vector<2x8x256xf32>
      %37 = arith.addf %35, %36 : vector<2x8x256xf32>
      %c0_15 = arith.constant 0 : index
      %c0_16 = arith.constant 0 : index
      %c0_17 = arith.constant 0 : index
      %38 = vector.load %arg4[%c0_15, %c0_16, %c0_17] : memref<2x8x256xf32, #tpu.memory_space<vmem>>, vector<2x8x256xf32>
      tpu.vector_store %arg4[%c0_15, %c0_16, %c0_17], %37 {strides = array<i32>} : memref<2x8x256xf32, #tpu.memory_space<vmem>>, vector<2x8x256xf32>,
    } else {
    }
    %c8_i32_8 = arith.constant 8 : i32
    %10 = arith.cmpi sge, %0, %c8_i32_8 : i32
    %11 = arith.extui %10 : i1 to i32
    %c0_i32_9 = arith.constant 0 : i32
    %12 = arith.cmpi ne, %11, %c0_i32_9 : i32
    scf.if %12 {
      %cst = arith.constant dense<0.000000e+00> : vector<8xf32>
      %13 = vector.multi_reduction <add>, %1, %cst [0, 2] : vector<2x8x256xf32> to vector<8xf32>
      %14 = vector.shape_cast %13 : vector<8xf32> to vector<1x8x1xf32>
      %15 = arith.mulf %1, %1 : vector<2x8x256xf32>
      %cst_10 = arith.constant dense<0.000000e+00> : vector<8xf32>
      %16 = vector.multi_reduction <add>, %15, %cst_10 [0, 2] : vector<2x8x256xf32> to vector<8xf32>
      %17 = vector.shape_cast %16 : vector<8xf32> to vector<1x8x1xf32>
      %cst_11 = arith.constant 0.001953125 : f32
      %18 = vector.broadcast %cst_11 : f32 to vector<1x8x1xf32>
      %19 = arith.mulf %14, %18 : vector<1x8x1xf32>
      %cst_12 = arith.constant 0.001953125 : f32
      %20 = vector.broadcast %cst_12 : f32 to vector<1x8x1xf32>
      %21 = arith.mulf %17, %20 : vector<1x8x1xf32>
      %22 = arith.mulf %19, %19 : vector<1x8x1xf32>
      %23 = arith.subf %21, %22 : vector<1x8x1xf32>
      %cst_13 = arith.constant 0.000000e+00 : f32
      %24 = vector.broadcast %cst_13 : f32 to vector<1x8x1xf32>
      %25 = arith.maximumf %23, %24 : vector<1x8x1xf32>
      %cst_14 = arith.constant 9.99999974E-6 : f32
      %26 = vector.broadcast %cst_14 : f32 to vector<1x8x1xf32>
      %27 = arith.addf %25, %26 : vector<1x8x1xf32>
      %28 = math.rsqrt %27 : vector<1x8x1xf32>
      %29 = arith.mulf %28, %3 : vector<1x8x1xf32>
      %30 = arith.mulf %19, %29 : vector<1x8x1xf32>
      %31 = arith.subf %5, %30 : vector<1x8x1xf32>
      %32 = vector.broadcast %29 : vector<1x8x1xf32> to vector<2x8x256xf32>
      %33 = arith.mulf %1, %32 : vector<2x8x256xf32>
      %34 = vector.broadcast %31 : vector<1x8x1xf32> to vector<2x8x256xf32>
      %35 = arith.addf %33, %34 : vector<2x8x256xf32>
      %c0_15 = arith.constant 0 : index
      %c0_16 = arith.constant 0 : index
      %c0_17 = arith.constant 0 : index
      %36 = vector.load %arg4[%c0_15, %c0_16, %c0_17] : memref<2x8x256xf32, #tpu.memory_space<vmem>>, vector<2x8x256xf32>
      tpu.vector_store %arg4[%c0_15, %c0_16, %c0_17], %35 {strides = array<i32>} : memref<2x8x256xf32, #tpu.memory_space<vmem>>, vector<2x8x256xf32>,
    } else {
    }
    return
  }
  func.func @transform_0(%arg0: i32) -> (i32, i32, i32) {
    %c0_i32 = arith.constant 0 : i32
    %c0_i32_0 = arith.constant 0 : i32
    %c0_i32_1 = arith.constant 0 : i32
    return %c0_i32, %arg0, %c0_i32_0 : i32, i32, i32
  }
  func.func @transform_1(%arg0: i32) -> (i32, i32) {
    %c0_i32 = arith.constant 0 : i32
    %c0_i32_0 = arith.constant 0 : i32
    return %arg0, %c0_i32 : i32, i32
  }
  func.func @transform_2(%arg0: i32) -> (i32, i32) {
    %c0_i32 = arith.constant 0 : i32
    %c0_i32_0 = arith.constant 0 : i32
    return %arg0, %c0_i32 : i32, i32
  }
  func.func @transform_3(%arg0: i32) -> (i32, i32, i32) {
    %c0_i32 = arith.constant 0 : i32
    %c0_i32_0 = arith.constant 0 : i32
    %c0_i32_1 = arith.constant 0 : i32
    return %c0_i32, %arg0, %c0_i32_0 : i32, i32, i32
  }
}

</mosaic_0001>

<llo_original>
// kernel: tpu_custom_call.1
$region0: #{tpu_custom_call.1}
  #allocation0 [shape = 'u32[]', space=smem, size = 0x4, offset = 0x4, fixed_abs, tag = 'smem constant byte address 0x4 - core index']
  #allocation1 [shape = 'u32[72,128]{1,0:T(1,128)}', space=vmem, size = 0x9000, scoped, tag = 'internal scratch']
  %s0 = inlined_call_operand.hbm [shape: f32[2,16,256], index: 0, kind: input, shape index: {}]
  %s1 = inlined_call_operand.vmem [shape: f32[16,1], index: 1, kind: input, shape index: {}]
  %s2 = inlined_call_operand.vmem [shape: f32[16,1], index: 2, kind: input, shape index: {}]
  %s3 = inlined_call_operand.hbm [shape: f32[2,16,256], index: 3, kind: output, shape index: {}]
  %s4 = sld [smem:[#allocation0]]
  $region57: #{tpu_custom_call.1} parent=0
    _
  %s6 = ssub.s32 1, %s4
  %s7 = scalar_select 0, %s6, %s4
  $region1: #{tpu_custom_call.1} parent=0
    #allocation2 [shape = 'u8[32768]{0}', space=vmem, size = 0x8000, scoped, tag = 'input window, operand 0']
    #allocation3 [shape = 's32[2]{0}', space=sflag, size = 0x8, scoped, tag = 'scoped memory for tpu_custom_call.1']
    #allocation4 [shape = 's32[2]{0}', space=sflag, size = 0x8, scoped, tag = 'scoped memory for tpu_custom_call.1']
    #allocation5 [shape = 'u8[32768]{0}', space=vmem, size = 0x8000, scoped, tag = 'output window, operand 0']
    %8 = vsyncpa [#allocation3], 0
    %s9 = scalar_lea.sflag [#allocation3], 1
    %10 = vsyncpa %s9, 0
    %11 = vsyncpa [#allocation4], 0
    %s12 = scalar_lea.sflag [#allocation4], 1
    %13 = vsyncpa %s12, 0
    loop: start=0, step=1, limit=4
    $region2: #{tpu_custom_call.1} parent=1 // loop_pre_header
      _
    $region3: #{tpu_custom_call.1} parent=1 // loop_header
      %s15 = sphi 0, %s19
      %p16 = scmp.ge.s32.totalorder %s15, 4
      %s25 = sphi 0, %s27
      %s28 = sphi 0, %s25
      %s29 = sphi 0, %s28
      %s45 = sphi 0, %s29
      %s51 = sphi 0, %s53
      %s54 = sphi 0, %s51
      %s55 = sphi 0, %s54
      %s71 = sphi 0, %s55
      %s77 = sphi 0, %s79
      %s80 = sphi 0, %s77
      %s81 = sphi 0, %s80
      %s97 = sphi 0, %s81
      %s103 = sphi 0, %s105
      %s106 = sphi 0, %s103
      %s107 = sphi 0, %s106
      %s123 = sphi 0, %s107
    $region4: #{tpu_custom_call.1} parent=1 // loop_header_branch
      %18 = sbr.rel (%p16) target = $region8
    $region5: #{tpu_custom_call.1} parent=1 // loop_body
      %s20 = ssub.s32 %s15, 1
      %s21 = ssub.s32 %s15, 2
      %s22 = sadd.s32 %s15, 1
      %s23 = ssub.s32 %s15, %s22
      %p24 = scmp.eq.s32.totalorder %s23, 0
      %s26 = sadd.s32 %s25, 1
      %s27 = scalar_select %p24, %s25, %s26
      %p30 = pneg %p24
      %p31 = scmp.eq.s32.totalorder %s15, 1
      %p32 = por %p30, %p31
      %p33 = scmp.ne.s32.totalorder %s25, %s28
      %p34 = scmp.eq.s32.totalorder %s15, 0
      %p35 = por %p33, %p34
      %p36 = scmp.ne.s32.totalorder %s25, %s28
      %p37 = scmp.eq.s32.totalorder %s20, 1
      %p38 = por %p36, %p37
      %p39 = scmp.ne.s32.totalorder %s28, %s29
      %p40 = scmp.eq.s32.totalorder %s20, 0
      %p41 = por %p39, %p40
      %p42 = scmp.ne.s32.totalorder %s28, %s29
      %p43 = scmp.eq.s32.totalorder %s21, 1
      %p44 = por %p42, %p43
      %p46 = scmp.ne.s32.totalorder %s29, %s45
      %p47 = scmp.eq.s32.totalorder %s21, 0
      %p48 = por %p46, %p47
      %s49 = ssub.s32 %s15, %s22
      %p50 = scmp.eq.s32.totalorder %s49, 0
      %s52 = sadd.s32 %s51, 1
      %s53 = scalar_select %p50, %s51, %s52
      %p56 = pneg %p50
      %p57 = scmp.eq.s32.totalorder %s15, 1
      %p58 = por %p56, %p57
      %p59 = scmp.ne.s32.totalorder %s51, %s54
      %p60 = scmp.eq.s32.totalorder %s15, 0
      %p61 = por %p59, %p60
      %p62 = scmp.ne.s32.totalorder %s51, %s54
      %p63 = scmp.eq.s32.totalorder %s20, 1
      %p64 = por %p62, %p63
      %p65 = scmp.ne.s32.totalorder %s54, %s55
      %p66 = scmp.eq.s32.totalorder %s20, 0
      %p67 = por %p65, %p66
      %p68 = scmp.ne.s32.totalorder %s54, %s55
      %p69 = scmp.eq.s32.totalorder %s21, 1
      %p70 = por %p68, %p69
      %p72 = scmp.ne.s32.totalorder %s55, %s71
      %p73 = scmp.eq.s32.totalorder %s21, 0
      %p74 = por %p72, %p73
      %s75 = ssub.s32 %s15, %s22
      %p76 = scmp.eq.s32.totalorder %s75, 0
      %s78 = sadd.s32 %s77, 1
      %s79 = scalar_select %p76, %s77, %s78
      %p82 = pneg %p76
      %p83 = scmp.eq.s32.totalorder %s15, 1
      %p84 = por %p82, %p83
      %p85 = scmp.ne.s32.totalorder %s77, %s80
      %p86 = scmp.eq.s32.totalorder %s15, 0
      %p87 = por %p85, %p86
      %p88 = scmp.ne.s32.totalorder %s77, %s80
      %p89 = scmp.eq.s32.totalorder %s20, 1
      %p90 = por %p88, %p89
      %p91 = scmp.ne.s32.totalorder %s80, %s81
      %p92 = scmp.eq.s32.totalorder %s20, 0
      %p93 = por %p91, %p92
      %p94 = scmp.ne.s32.totalorder %s80, %s81
      %p95 = scmp.eq.s32.totalorder %s21, 1
      %p96 = por %p94, %p95
      %p98 = scmp.ne.s32.totalorder %s81, %s97
      %p99 = scmp.eq.s32.totalorder %s21, 0
      %p100 = por %p98, %p99
      %s101 = ssub.s32 %s15, %s22
      %p102 = scmp.eq.s32.totalorder %s101, 0
      %s104 = sadd.s32 %s103, 1
      %s105 = scalar_select %p102, %s103, %s104
      %p108 = pneg %p102
      %p109 = scmp.eq.s32.totalorder %s15, 1
      %p110 = por %p108, %p109
      %p111 = scmp.ne.s32.totalorder %s103, %s106
      %p112 = scmp.eq.s32.totalorder %s15, 0
      %p113 = por %p111, %p112
      %p114 = scmp.ne.s32.totalorder %s103, %s106
      %p115 = scmp.eq.s32.totalorder %s20, 1
      %p116 = por %p114, %p115
      %p117 = scmp.ne.s32.totalorder %s106, %s107
      %p118 = scmp.eq.s32.totalorder %s20, 0
      %p119 = por %p117, %p118
      %p120 = scmp.ne.s32.totalorder %s106, %s107
      %p121 = scmp.eq.s32.totalorder %s21, 1
      %p122 = por %p120, %p121
      %p124 = scmp.ne.s32.totalorder %s107, %s123
      %p125 = scmp.eq.s32.totalorder %s21, 0
      %p126 = por %p124, %p125
      %p127 = scmp.le.s32.totalorder 1, %s15
      %p128 = scmp.lt.s32.totalorder %s15, 3
      %p129 = pnand %p127, %p128
      %p130 = pneg %p129
      // Predicated region
      $region9: #{tpu_custom_call.1} parent=5 // pred_check
        _
      $region10: #{tpu_custom_call.1} parent=5 // pred_check_branch
        %132 = sbr.rel (%p129) target = $region12
      $region11: #{tpu_custom_call.1} parent=5 // pred_region
        %s133 = ssub.s32 %s15, 1
      $region12: #{tpu_custom_call.1} parent=5 // pred_fallthru
        _
      %p134 = scmp.lt.s32.totalorder %s15, 2
      // Predicated region
      $region13: #{tpu_custom_call.1} parent=5 // pred_check
        %p135 = pneg %p134
      $region14: #{tpu_custom_call.1} parent=5 // pred_check_branch
        %137 = sbr.rel (%p135) target = $region16
      $region15: #{tpu_custom_call.1} parent=5 // pred_region
        // Predicated region
        $region17: #{tpu_custom_call.1} parent=15 // pred_check
          %p138 = pneg %p35
        $region18: #{tpu_custom_call.1} parent=15 // pred_check_branch
          %140 = sbr.rel (%p138) target = $region20
        $region19: #{tpu_custom_call.1} parent=15 // pred_region
          %s141 = sand.u32 %s25, 1
          %s142 = scalar_lea.sflag [#allocation3], %s141
          %s143 = sand.u32 %s25, 1
          %s144 = smul.addr %s143, 32
          %s145 = scalar_lea.vmem [#allocation2], %s144
          %147 = vsyncadd %s142, 0
          %s148 = smul.addr %s15, 2
          %s149 = smul.addr %s148, 8
          %s150 = scalar_lea.hbm %s0, %s149
          %s151 = sshll.u32 %s150, 4
          %s152 = int_to_ptr.hbm [resolvable:$true] %s151
          %s153 = sshll.u32 %s145, 4
          %s154 = int_to_ptr.vmem [resolvable:$true] %s153
          %159 = dma.hbm_to_vmem [thread:$0]  %s152, 512, %s154, %s142, 512, 256, 16
        $region20: #{tpu_custom_call.1} parent=15 // pred_fallthru
          _
        // Predicated region
        $region21: #{tpu_custom_call.1} parent=15 // pred_check
          %p160 = pneg %p61
        $region22: #{tpu_custom_call.1} parent=15 // pred_check_branch
          %162 = sbr.rel (%p160) target = $region24
        $region23: #{tpu_custom_call.1} parent=15 // pred_region
          %p163 = scmp.lt.s32.totalorder %s15, 1
          %s164 = scalar_select %p163, %s15, 1
          %s165 = smul.addr %s164, 8
          %s166 = scalar_lea.vmem %s1, %s165
        $region24: #{tpu_custom_call.1} parent=15 // pred_fallthru
          _
        // Predicated region
        $region25: #{tpu_custom_call.1} parent=15 // pred_check
          %p167 = pneg %p87
        $region26: #{tpu_custom_call.1} parent=15 // pred_check_branch
          %169 = sbr.rel (%p167) target = $region28
        $region27: #{tpu_custom_call.1} parent=15 // pred_region
          %p170 = scmp.lt.s32.totalorder %s15, 1
          %s171 = scalar_select %p170, %s15, 1
          %s172 = smul.addr %s171, 8
          %s173 = scalar_lea.vmem %s2, %s172
        $region28: #{tpu_custom_call.1} parent=15 // pred_fallthru
          _
      $region16: #{tpu_custom_call.1} parent=5 // pred_fallthru
        _
      %p174 = scmp.le.s32.totalorder 1, %s15
      %p175 = scmp.lt.s32.totalorder %s15, 3
      %p176 = pnand %p174, %p175
      %p177 = pneg %p176
      // Predicated region
      $region29: #{tpu_custom_call.1} parent=5 // pred_check
        _
      $region30: #{tpu_custom_call.1} parent=5 // pred_check_branch
        %179 = sbr.rel (%p176) target = $region32
      $region31: #{tpu_custom_call.1} parent=5 // pred_region
        %s180 = ssub.s32 %s15, 1
        %s181 = sand.u32 %s28, 1
        %s182 = scalar_lea.sflag [#allocation3], %s181
        %s183 = sand.u32 %s28, 1
        %s184 = smul.addr %s183, 32
        %s185 = scalar_lea.vmem [#allocation2], %s184
        // Predicated region
        $region33: #{tpu_custom_call.1} parent=31 // pred_check
          %p186 = pneg %p41
        $region34: #{tpu_custom_call.1} parent=31 // pred_check_branch
          %188 = sbr.rel (%p186) target = $region36
        $region35: #{tpu_custom_call.1} parent=31 // pred_region
          %190 = dma.done %s182, 512
        $region36: #{tpu_custom_call.1} parent=31 // pred_fallthru
          _
        %s191 = sand.u32 %s28, 1
        %s192 = scalar_lea.sflag [#allocation3], %s191
        %s193 = sand.u32 %s28, 1
        %s194 = smul.addr %s193, 32
        %s195 = scalar_lea.vmem [#allocation2], %s194
        %p196 = pneg %p41
        %p197 = pneg %p38
        %p198 = scmp.lt.s32.totalorder %s20, 1
        %s199 = scalar_select %p198, %s20, 1
        %s200 = smul.addr %s199, 8
        %s201 = scalar_lea.vmem %s1, %s200
        %p202 = pneg %p67
        %p203 = pneg %p64
        %p204 = scmp.lt.s32.totalorder %s20, 1
        %s205 = scalar_select %p204, %s20, 1
        %s206 = smul.addr %s205, 8
        %s207 = scalar_lea.vmem %s2, %s206
        %p208 = pneg %p93
        %p209 = pneg %p90
        %p210 = pneg %p119
        %p211 = pneg %p116
        %s212 = sand.u32 %s106, 1
        %s213 = scalar_lea.sflag [#allocation4], %s212
        %s214 = sand.u32 %s106, 1
        %s215 = smul.addr %s214, 32
        %s216 = scalar_lea.vmem [#allocation5], %s215
        %p217 = scmp.lt.s32.totalorder %s20, 1
        %s218 = scalar_select %p217, %s20, 1
        %s219 = smul.addr %s218, 8
        %s220 = scalar_lea.vmem %s1, %s219
        %p221 = scmp.lt.s32.totalorder %s20, 1
        %s222 = scalar_select %p221, %s20, 1
        %s223 = smul.addr %s222, 8
        %s224 = scalar_lea.vmem %s2, %s223
        %s225 = smul.u32 %s20, 8
        %v226 = vld [vmem:[%s185] sm:$0xff]
        %v227 = vld [vmem:[%s185 + $0x8] sm:$0xff]
        %v228 = vld [vmem:[%s185 + $0x10] sm:$0xff]
        %v229 = vld [vmem:[%s185 + $0x18] sm:$0xff]
        %v230 = vld [vmem:[%s220] sm:$0xff]
        %v231 = vld [vmem:[%s224] sm:$0xff]
        %s232 = sadd.s32 %s225, 8
        %p233 = scmp.le.s32.totalorder %s232, 8
        // Predicated region
        $region37: #{tpu_custom_call.1} parent=31 // pred_check
          %p234 = pneg %p233
        $region38: #{tpu_custom_call.1} parent=31 // pred_check_branch
          %236 = sbr.rel (%p234) target = $region40
        $region39: #{tpu_custom_call.1} parent=31 // pred_region
          %v237 = vadd.f32 %v226, %v227
          %238 = vadd.xlane.f32.xlu0 %v237
          %v239 = vpop.xlane.xlu0 %238
          %v240 = vadd.f32 %v228, %v229
          %241 = vadd.xlane.f32.xlu0 %v240
          %v242 = vpop.xlane.xlu0 %241
          %v243 = vmul.f32 %v226, %v226
          %v244 = vmul.f32 %v227, %v227
          %v245 = vmul.f32 %v228, %v228
          %v246 = vmul.f32 %v229, %v229
          %v247 = vadd.f32 %v243, %v244
          %248 = vadd.xlane.f32.xlu0 %v247
          %v249 = vpop.xlane.xlu0 %248
          %v250 = vadd.f32 %v245, %v246
          %251 = vadd.xlane.f32.xlu0 %v250
          %v252 = vpop.xlane.xlu0 %251
          %v253 = vmul.f32 %v239, 0.00390625
          %v254 = vmul.f32 %v242, 0.00390625
          %v255 = vmul.f32 %v249, 0.00390625
          %v256 = vmul.f32 %v252, 0.00390625
          %v257 = vmul.f32 %v253, %v253
          %v258 = vmul.f32 %v254, %v254
          %v259 = vsub.f32 %v255, %v257
          %v260 = vsub.f32 %v256, %v258
          %v261 = vmax.f32 %v259, 0.0
          %v262 = vmax.f32 %v260, 0.0
          %v263 = vadd.f32 %v261, 1e-05
          %v264 = vadd.f32 %v262, 1e-05
          %v265 = vrsqrt.pop %v263
          %v266 = vmul.f32 %v265, %v263
          %v267 = vmul.f32 %v266, %v265
          %v268 = vmul.f32 0.5, %v267
          %v269 = vsub.f32 1.5, %v268
          %v270 = vmul.f32 %v265, %v269
          %vm271 = vweird.f32 %v263
          %vm272 = vweird.f32 %v265
          %vm273 = vmor %vm271, %vm272
          %v274 = vsel %vm273, %v265, %v270
          %v275 = vrsqrt.pop %v264
          %v276 = vmul.f32 %v275, %v264
          %v277 = vmul.f32 %v276, %v275
          %v278 = vmul.f32 0.5, %v277
          %v279 = vsub.f32 1.5, %v278
          %v280 = vmul.f32 %v275, %v279
          %vm281 = vweird.f32 %v264
          %vm282 = vweird.f32 %v275
          %vm283 = vmor %vm281, %vm282
          %v284 = vsel %vm283, %v275, %v280
          %v285 = vmul.f32 %v274, %v230
          %v286 = vmul.f32 %v284, %v230
          %v287 = vmul.f32 %v253, %v285
          %v288 = vmul.f32 %v254, %v286
          %v289 = vsub.f32 %v231, %v287
          %v290 = vsub.f32 %v231, %v288
          %292 = vset.pattern.permute.xlu0 0
          %293 = vperm.xlu0 %292, %v285
          %v294 = vpop.permute.xlu0 %293
          %297 = vset.pattern.permute.xlu0 0
          %298 = vperm.xlu0 %297, %v286
          %v299 = vpop.permute.xlu0 %298
          %v301 = vmul.f32 %v226, %v294
          %v302 = vmul.f32 %v227, %v294
          %v303 = vmul.f32 %v228, %v299
          %v304 = vmul.f32 %v229, %v299
          %306 = vset.pattern.permute.xlu0 0
          %307 = vperm.xlu0 %306, %v289
          %v308 = vpop.permute.xlu0 %307
          %311 = vset.pattern.permute.xlu0 0
          %312 = vperm.xlu0 %311, %v290
          %v313 = vpop.permute.xlu0 %312
          %v315 = vadd.f32 %v301, %v308
          %v316 = vadd.f32 %v302, %v308
          %v317 = vadd.f32 %v303, %v313
          %v318 = vadd.f32 %v304, %v313
          %319 = vst [vmem:[%s216] sm:$0xff] %v315
          %320 = vst [vmem:[%s216 + $0x8] sm:$0xff] %v316
          %321 = vst [vmem:[%s216 + $0x10] sm:$0xff] %v317
          %322 = vst [vmem:[%s216 + $0x18] sm:$0xff] %v318
        $region40: #{tpu_custom_call.1} parent=31 // pred_fallthru
          _
        %p323 = scmp.ge.s32.totalorder %s225, 8
        // Predicated region
        $region41: #{tpu_custom_call.1} parent=31 // pred_check
          %p324 = pneg %p323
        $region42: #{tpu_custom_call.1} parent=31 // pred_check_branch
          %326 = sbr.rel (%p324) target = $region44
        $region43: #{tpu_custom_call.1} parent=31 // pred_region
          %v327 = vadd.f32 %v226, %v227
          %v328 = vadd.f32 %v327, %v228
          %v329 = vadd.f32 %v328, %v229
          %330 = vadd.xlane.f32.xlu0 %v329
          %v331 = vpop.xlane.xlu0 %330
          %v332 = vmul.f32 %v226, %v226
          %v333 = vmul.f32 %v227, %v227
          %v334 = vmul.f32 %v228, %v228
          %v335 = vmul.f32 %v229, %v229
          %v336 = vadd.f32 %v332, %v333
          %v337 = vadd.f32 %v336, %v334
          %v338 = vadd.f32 %v337, %v335
          %339 = vadd.xlane.f32.xlu0 %v338
          %v340 = vpop.xlane.xlu0 %339
          %v341 = vmul.f32 %v331, 0.001953125
          %v342 = vmul.f32 %v340, 0.001953125
          %v343 = vmul.f32 %v341, %v341
          %v344 = vsub.f32 %v342, %v343
          %v345 = vmax.f32 %v344, 0.0
          %v346 = vadd.f32 %v345, 1e-05
          %v347 = vrsqrt.pop %v346
          %v348 = vmul.f32 %v347, %v346
          %v349 = vmul.f32 %v348, %v347
          %v350 = vmul.f32 0.5, %v349
          %v351 = vsub.f32 1.5, %v350
          %v352 = vmul.f32 %v347, %v351
          %vm353 = vweird.f32 %v346
          %vm354 = vweird.f32 %v347
          %vm355 = vmor %vm353, %vm354
          %v356 = vsel %vm355, %v347, %v352
          %v357 = vmul.f32 %v356, %v230
          %v358 = vmul.f32 %v341, %v357
          %v359 = vsub.f32 %v231, %v358
          %361 = vset.pattern.permute.xlu0 0
          %362 = vperm.xlu0 %361, %v357
          %v363 = vpop.permute.xlu0 %362
          %v365 = vmul.f32 %v226, %v363
          %v366 = vmul.f32 %v227, %v363
          %v367 = vmul.f32 %v228, %v363
          %v368 = vmul.f32 %v229, %v363
          %370 = vset.pattern.permute.xlu0 0
          %371 = vperm.xlu0 %370, %v359
          %v372 = vpop.permute.xlu0 %371
          %v374 = vadd.f32 %v365, %v372
          %v375 = vadd.f32 %v366, %v372
          %v376 = vadd.f32 %v367, %v372
          %v377 = vadd.f32 %v368, %v372
          %378 = vst [vmem:[%s216] sm:$0xff] %v374
          %379 = vst [vmem:[%s216 + $0x8] sm:$0xff] %v375
          %380 = vst [vmem:[%s216 + $0x10] sm:$0xff] %v376
          %381 = vst [vmem:[%s216 + $0x18] sm:$0xff] %v377
        $region44: #{tpu_custom_call.1} parent=31 // pred_fallthru
          _
        %s382 = sand.u32 %s106, 1
        %s383 = scalar_lea.sflag [#allocation4], %s382
        %s384 = sand.u32 %s106, 1
        %s385 = smul.addr %s384, 32
        %s386 = scalar_lea.vmem [#allocation5], %s385
        // Predicated region
        $region45: #{tpu_custom_call.1} parent=31 // pred_check
          %p387 = pneg %p116
        $region46: #{tpu_custom_call.1} parent=31 // pred_check_branch
          %389 = sbr.rel (%p387) target = $region48
        $region47: #{tpu_custom_call.1} parent=31 // pred_region
          %391 = vsyncadd %s383, 0
          %s392 = smul.addr %s20, 2
          %s393 = smul.addr %s392, 8
          %s394 = scalar_lea.hbm %s3, %s393
          %s395 = sshll.u32 %s386, 4
          %s396 = int_to_ptr.vmem [resolvable:$true] %s395
          %s397 = sshll.u32 %s394, 4
          %s398 = int_to_ptr.hbm [resolvable:$true] %s397
          %403 = dma.vmem_to_hbm [thread:$0]  %s396, 512, %s398, %s383, 256, 512, 16
        $region48: #{tpu_custom_call.1} parent=31 // pred_fallthru
          _
      $region32: #{tpu_custom_call.1} parent=5 // pred_fallthru
        _
      %p404 = scmp.le.s32.totalorder 2, %s15
      // Predicated region
      $region49: #{tpu_custom_call.1} parent=5 // pred_check
        %p405 = pneg %p404
      $region50: #{tpu_custom_call.1} parent=5 // pred_check_branch
        %407 = sbr.rel (%p405) target = $region52
      $region51: #{tpu_custom_call.1} parent=5 // pred_region
        %s408 = ssub.s32 %s15, 2
        // Predicated region
        $region53: #{tpu_custom_call.1} parent=51 // pred_check
          %p409 = pneg %p122
        $region54: #{tpu_custom_call.1} parent=51 // pred_check_branch
          %411 = sbr.rel (%p409) target = $region56
        $region55: #{tpu_custom_call.1} parent=51 // pred_region
          %s412 = sand.u32 %s107, 1
          %s413 = scalar_lea.sflag [#allocation4], %s412
          %s414 = sand.u32 %s107, 1
          %s415 = smul.addr %s414, 32
          %s416 = scalar_lea.vmem [#allocation5], %s415
          %418 = dma.done %s413, 512
        $region56: #{tpu_custom_call.1} parent=51 // pred_fallthru
          _
      $region52: #{tpu_custom_call.1} parent=5 // pred_fallthru
        _
    $region6: #{tpu_custom_call.1} parent=1 // loop_footer
      %s19 = sadd.s32 1, %s15
    $region7: #{tpu_custom_call.1} parent=1 // loop_footer_branch
      %14 = sbr.rel target = $region3
    $region8: #{tpu_custom_call.1} parent=1 // loop_exit
      _
    %419 = vsyncpa [#allocation3], 1
    %s420 = scalar_lea.sflag [#allocation3], 1
    %421 = vsyncpa %s420, 1
    %422 = vsyncpa [#allocation4], 1
    %s423 = scalar_lea.sflag [#allocation4], 1
    %424 = vsyncpa %s423, 1

</llo_original>
